<compile_context>
chip_gen: v5e
topology: v5e:2x2
jax: 0.10.0
libtpu: 0.0.40
codegen_flags: <defaults>
</compile_context>

<pallas_src>
import functools

import jax
import jax.numpy as jnp
from jax.experimental import pallas as pl
from jax.experimental.pallas import tpu as pltpu


def _round_up(x: int, m: int) -> int:
    return (x + m - 1) // m * m


def _vmem_capacity_bytes() -> int:
    """Per-core VMEM capacity; falls back to 64 MiB (v7x lower bound)."""
    try:
        return int(pltpu.get_tpu_info().vmem_capacity_bytes)
    except Exception:
        return 64 * 1024 * 1024


# ---------------------------------------------------------------------------
# Kernel 1: VMEM-resident table, one-hot MXU gather.
#   idx_ref: (tile, 1) int32 VMEM block of token ids for this tile
#   w_ref:   (V, D) weight table, resident in VMEM (constant block index)
#   out_ref: (tile, D) output block
# out = one_hot(idx, V) @ W  -- exact for a 0/1 one-hot, fully pipelined on
# the MXU, no scalar-dependent per-row copies and no masked partial stores.
# ---------------------------------------------------------------------------
def _make_onehot_gather_kernel(token_tile: int, num_embeddings: int):
    def kernel(idx_ref, w_ref, out_ref):
        ids = idx_ref[...]                                            # (T, 1)
        cols = jax.lax.broadcasted_iota(jnp.int32,
                                        (token_tile, num_embeddings), 1)
        one_hot = jnp.where(ids == cols, 1.0, 0.0).astype(w_ref.dtype)  # (T, V)
        out_ref[...] = jnp.dot(
            one_hot, w_ref[...], preferred_element_type=jnp.float32
        ).astype(out_ref.dtype)

    return kernel


# ---------------------------------------------------------------------------
# Kernel 2: weight stays in HBM (memory_space=pl.ANY).  Scalar-prefetched
# indices drive per-row async copies that land *directly* in the
# auto-pipelined (tile, D) output block (no intermediate gather buffer), with
# `nbuf` row-DMAs kept in flight.  Padded tail rows (>= n_tokens) are skipped.
# ---------------------------------------------------------------------------
def _make_hbm_gather_kernel(token_tile: int, nbuf: int, n_tokens: int):
    def kernel(idx_ref, w_hbm, out_ref, sems):
        base = pl.program_id(0) * token_tile

        def row_copy(t):
            row = idx_ref[base + t]
            return pltpu.make_async_copy(
                w_hbm.at[pl.ds(row, 1), :],
                out_ref.at[pl.ds(t, 1), :],
                sems.at[t % nbuf],
            )

        def start(t):
            @pl.when(base + t < n_tokens)          # skip padded tail tokens
            def _():
                row_copy(t).start()

        def wait(t):
            @pl.when(base + t < n_tokens)          # predicate matches start(t)
            def _():
                row_copy(t).wait()

        @pl.loop(0, nbuf)                          # prologue: fill DMA window
        def _(t):
            start(t)

        @pl.loop(nbuf, token_tile)                 # steady state: wait 1, issue 1
        def _(t):
            wait(t - nbuf)
            start(t)

        @pl.loop(token_tile - nbuf, token_tile)    # epilogue: drain
        def _(t):
            wait(t)

    return kernel


@functools.partial(jax.jit,
                   static_argnames=("token_tile", "table_vmem_budget"))
def embedding3d_forward(indices, weight, *, token_tile: int = 256,
                        table_vmem_budget: int = None):
    """Forward of Embedding3D at depth=1: out[b, s, :] = weight[indices[b, s], :].

    indices: [batch, seq] integer array; weight: [num_embeddings, embed_dim].
    table_vmem_budget: optional cap (bytes) on table size for the VMEM-resident
    path; None = auto-derive from device VMEM.  0 forces the HBM-gather path.
    """
    batch, seq = indices.shape
    num_embeddings, embed_dim = weight.shape
    n_tokens = batch * seq
    dtype_bytes = jnp.dtype(weight.dtype).itemsize

    # Clamp so a bad token id can never become an out-of-bounds HBM DMA /
    # VMEM read (TPU bounds checking defaults to DMA-only).  Note this differs
    # from F.embedding, which would error on out-of-range ids.
    flat_idx = jnp.clip(indices.reshape(n_tokens).astype(jnp.int32),
                        0, num_embeddings - 1)

    # Token tiling: sublane-dense tiles (multiple of 8 rows) so each grid step
    # emits one dense (tile, embed_dim) output block.
    tile = max(8, min(_round_up(token_tile, 8), _round_up(n_tokens, 8)))
    n_pad = _round_up(n_tokens, tile)
    if n_pad != n_tokens:
        flat_idx = jnp.pad(flat_idx, (0, n_pad - n_tokens))  # pads with row 0
    num_tiles = n_pad // tile

    # --- VMEM budgeting (device-derived, conservative) ----------------------
    table_bytes = num_embeddings * embed_dim * dtype_bytes
    vmem_cap = _vmem_capacity_bytes()
    margin = 6 * 1024 * 1024                      # compiler scratch headroom
    out_bufs = 2 * tile * embed_dim * dtype_bytes  # double-buffered out blocks
    idx_bufs = 2 * tile * 4                        # double-buffered idx blocks
    onehot_bytes = tile * num_embeddings * (dtype_bytes + 4)  # one-hot + iota
    # Count the resident table twice: the constant-index input spec may be
    # double-buffered (important on v7x's 64 MiB/TC VMEM).
    resident_need = 2 * table_bytes + out_bufs + idx_bufs + onehot_bytes + margin

    use_resident = resident_need <= vmem_cap
    if table_vmem_budget is not None:
        use_resident = use_resident and (table_bytes <= table_vmem_budget)

    read_bytes = (table_bytes if use_resident
                  else n_pad * embed_dim * dtype_bytes)
    cost = pl.CostEstimate(
        flops=(2 * n_pad * num_embeddings * embed_dim) if use_resident else 0,
        transcendentals=0,
        bytes_accessed=read_bytes + n_pad * embed_dim * dtype_bytes + n_pad * 4,
    )
    compiler_params = pltpu.CompilerParams(
        # Token tiles are fully independent -> shardable across TensorCores.
        dimension_semantics=("parallel",),
        vmem_limit_bytes=int(min(
            vmem_cap,
            max(resident_need if use_resident else out_bufs + margin,
                32 * 1024 * 1024))),
    )

    if use_resident:
        # TODO(synk): add a second grid axis over embed_dim (table (V, d_tile),
        # out (tile, d_tile)) to keep very wide tables VMEM-resident as well.
        grid_spec = pl.GridSpec(
            grid=(num_tiles,),
            in_specs=[
                pl.BlockSpec((tile, 1), lambda i: (i, 0)),        # token ids
                pl.BlockSpec((num_embeddings, embed_dim),
                             lambda i: (0, 0)),                   # resident table
            ],
            out_specs=pl.BlockSpec((tile, embed_dim), lambda i: (i, 0)),
        )
        kernel = _make_onehot_gather_kernel(tile, num_embeddings)
        operands = (flat_idx.reshape(n_pad, 1), weight)
    else:
        # TODO(synk): for extremely large batch*seq, switch the prefetched
        # whole-array SMEM index to per-tile SMEM index blocks.
        nbuf = min(32, tile)   # 32 outstanding row DMAs to hide HBM latency
        grid_spec = pltpu.PrefetchScalarGridSpec(
            num_scalar_prefetch=1,
            grid=(num_tiles,),
            in_specs=[pl.BlockSpec(memory_space=pl.ANY)],   # weight stays in HBM
            out_specs=pl.BlockSpec((tile, embed_dim), lambda i, idx: (i, 0)),
            scratch_shapes=[pltpu.SemaphoreType.DMA((nbuf,))],
        )
        kernel = _make_hbm_gather_kernel(tile, nbuf, n_tokens)
        operands = (flat_idx, weight)

    out_flat = pl.pallas_call(
        kernel,
        out_shape=jax.ShapeDtypeStruct((n_pad, embed_dim), weight.dtype),
        grid_spec=grid_spec,
        compiler_params=compiler_params,
        cost_estimate=cost,
    )(*operands)

    return out_flat[:n_tokens].reshape(batch, seq, embed_dim)


def init_embedding_weight(key, num_embeddings, embed_dim, padding_idx=None,
                          dtype=jnp.float32):
    # Mirrors Embedding3D.reset_parameters: normal init, then
    # _fill_padding_idx_with_zero zeroes the padding row, which reproduces
    # F.embedding's padding_idx behaviour for the forward pass.
    # TODO(synk): a backward/VJP must also zero gradient rows at padding_idx
    # and all-reduce grads over input_x_weight_parallel_mode (depth > 1).
    w = jax.random.normal(key, (num_embeddings, embed_dim), dtype=dtype)
    if padding_idx is not None:
        w = w.at[padding_idx].set(0.0)
    return w


if __name__ == "__main__":
    key = jax.random.PRNGKey(0)
    k_w, k_idx, k_w2, k_idx2 = jax.random.split(key, 4)
    padding_idx = 0

    # --- Test 1: small shapes, resident one-hot MXU path (depth = 1 so
    #     embed_dim_per_partition == embed_dim). ---
    V1, D1, B1, S1 = 64, 128, 2, 8
    w1 = init_embedding_weight(k_w, V1, D1, padding_idx=padding_idx)
    idx1 = jax.random.randint(k_idx, (B1, S1), 0, V1, dtype=jnp.int32)
    out1 = jax.block_until_ready(embedding3d_forward(idx1, w1))
    ref1 = jnp.take(w1, idx1, axis=0)
    assert out1.shape == (B1, S1, D1), out1.shape
    assert jnp.allclose(out1, ref1), "resident-table path mismatch"

    # --- Test 2: multi-tile with a padded tail; same data through both the
    #     resident path and the forced HBM manual-gather path. ---
    V2, D2, B2, S2 = 512, 256, 2, 250      # 500 tokens -> 2 tiles of 256
    w2 = init_embedding_weight(k_w2, V2, D2, padding_idx=padding_idx)
    idx2 = jax.random.randint(k_idx2, (B2, S2), 0, V2, dtype=jnp.int32)
    ref2 = jnp.take(w2, idx2, axis=0)

    out2a = jax.block_until_ready(embedding3d_forward(idx2, w2))
    assert out2a.shape == (B2, S2, D2), out2a.shape
    assert jnp.allclose(out2a, ref2), "resident multi-tile path mismatch"

    out2b = jax.block_until_ready(
        embedding3d_forward(idx2, w2, table_vmem_budget=0))   # force HBM path
    assert jnp.allclose(out2b, ref2), "HBM gather path mismatch"

    print("KERNEL_OK")
</pallas_src>

<mosaic_0001>
module attributes {stable_mosaic.version = 11 : i64} {
  func.func @kernel(%arg0: i32, %arg1: memref<16x1xi32, #tpu.memory_space<vmem>>, %arg2: memref<64x128xf32, #tpu.memory_space<vmem>>, %arg3: memref<16x128xf32, #tpu.memory_space<vmem>>) attributes {dimension_semantics = [#tpu.dimension_semantics<parallel>], iteration_bounds = array<i64: 1>, scalar_prefetch = 0 : i64, scratch_operands = 0 : i64, tpu.core_type = #tpu.core_type<tc>, window_params = [{transform_indices = @transform_0, window_bounds = array<i64: 16, 1>}, {pipeline_mode = #tpu.pipeline_mode<synchronous>, transform_indices = @transform_1, window_bounds = array<i64: 64, 128>}, {transform_indices = @transform_2, window_bounds = array<i64: 16, 128>}]} {
    %c0 = arith.constant 0 : index
    %c0_0 = arith.constant 0 : index
    %0 = vector.load %arg1[%c0, %c0_0] : memref<16x1xi32, #tpu.memory_space<vmem>>, vector<16x1xi32>
    %1 = tpu.iota {dimensions = array<i32: 1>} : vector<16x64xi32>
    %2 = vector.broadcast %0 : vector<16x1xi32> to vector<16x64xi32>
    %3 = arith.cmpi eq, %2, %1 : vector<16x64xi32>
    %cst = arith.constant 1.000000e+00 : f32
    %cst_1 = arith.constant 0.000000e+00 : f32
    %4 = vector.broadcast %cst : f32 to vector<16x64xf32>
    %5 = vector.broadcast %cst_1 : f32 to vector<16x64xf32>
    %6 = arith.select %3, %4, %5 : vector<16x64xi1>, vector<16x64xf32>
    %c0_2 = arith.constant 0 : index
    %c0_3 = arith.constant 0 : index
    %7 = vector.load %arg2[%c0_2, %c0_3] : memref<64x128xf32, #tpu.memory_space<vmem>>, vector<64x128xf32>
    %cst_4 = arith.constant dense<0.000000e+00> : vector<16x128xf32>
    %8 = tpu.matmul %6, %7, %cst_4 {dimension_numbers = #tpu.dot_dimension_numbers<[1], [0], [0], [1], [0, 0, 1, 1], [], []>} : vector<16x64xf32>, vector<64x128xf32>, vector<16x128xf32> -> vector<16x128xf32>
    %c0_5 = arith.constant 0 : index
    %c0_6 = arith.constant 0 : index
    %9 = vector.load %arg3[%c0_5, %c0_6] : memref<16x128xf32, #tpu.memory_space<vmem>>, vector<16x128xf32>
    tpu.vector_store %arg3[%c0_5, %c0_6], %8 {strides = array<i32>} : memref<16x128xf32, #tpu.memory_space<vmem>>, vector<16x128xf32>,
    return
  }
  func.func @transform_0(%arg0: i32) -> (i32, i32) {
    %c0_i32 = arith.constant 0 : i32
    %c0_i32_0 = arith.constant 0 : i32
    return %arg0, %c0_i32 : i32, i32
  }
  func.func @transform_1(%arg0: i32) -> (i32, i32) {
    %c0_i32 = arith.constant 0 : i32
    %c0_i32_0 = arith.constant 0 : i32
    %c0_i32_1 = arith.constant 0 : i32
    return %c0_i32, %c0_i32_0 : i32, i32
  }
  func.func @transform_2(%arg0: i32) -> (i32, i32) {
    %c0_i32 = arith.constant 0 : i32
    %c0_i32_0 = arith.constant 0 : i32
    return %arg0, %c0_i32 : i32, i32
  }
}

</mosaic_0001>

<llo_original>
// kernel: embedding3d_forward.1
$region0: #{embedding3d_forward.1}
  #allocation0 [shape = 'u32[]', space=smem, size = 0x4, offset = 0x4, fixed_abs, tag = 'smem constant byte address 0x4 - core index']
  #allocation1 [shape = 'u32[72,128]{1,0:T(1,128)}', space=vmem, size = 0x9000, scoped, tag = 'internal scratch']
  %s0 = inlined_call_operand.vmem [shape: s32[16,1], index: 0, kind: input, shape index: {}]
  %s1 = inlined_call_operand.hbm [shape: f32[64,128], index: 1, kind: input, shape index: {}]
  %s2 = inlined_call_operand.hbm [shape: f32[16,128], index: 2, kind: output, shape index: {}]
  %s3 = sld [smem:[#allocation0]]
  $region22: #{embedding3d_forward.1} parent=0
    _
  %s5 = ssub.s32 1, %s3
  %s6 = scalar_select 0, %s5, %s3
  $region1: #{embedding3d_forward.1} parent=0
    #allocation2 [shape = 'u8[32768]{0}', space=vmem, size = 0x8000, scoped, tag = 'input window, operand 1, single buffered']
    #allocation3 [shape = 's32[1]{0}', space=sflag, size = 0x4, scoped, tag = 'scoped memory for embedding3d_forward.1']
    #allocation4 [shape = 's32[1]{0}', space=sflag, size = 0x4, scoped, tag = 'scoped memory for embedding3d_forward.1']
    #allocation5 [shape = 'u8[8192]{0}', space=vmem, size = 0x2000, scoped, tag = 'output window, operand 0, single buffered']
    %7 = vsyncpa [#allocation3], 0
    %8 = vsyncpa [#allocation4], 0
    // Predicated region
    $region2: #{embedding3d_forward.1} parent=1 // pred_check
      _
    $region3: #{embedding3d_forward.1} parent=1 // pred_check_branch
      %10 = sbr.rel (0) target = $region5
    $region4: #{embedding3d_forward.1} parent=1 // pred_region
      _
    $region5: #{embedding3d_forward.1} parent=1 // pred_fallthru
      _
    // Predicated region
    $region6: #{embedding3d_forward.1} parent=1 // pred_check
      _
    $region7: #{embedding3d_forward.1} parent=1 // pred_check_branch
      %12 = sbr.rel (0) target = $region9
    $region8: #{embedding3d_forward.1} parent=1 // pred_region
      %14 = vsyncadd [#allocation3], 0
      %s15 = sshll.u32 %s1, 4
      %s16 = int_to_ptr.hbm [resolvable:$true] %s15
      %s17 = sshll.u32 [#allocation2], 4
      %s18 = int_to_ptr.vmem [resolvable:$true] %s17
      %23 = dma.hbm_to_vmem [thread:$0]  %s16, 1024, %s18, [#allocation3], 128, 128, 8
    $region9: #{embedding3d_forward.1} parent=1 // pred_fallthru
      _
    // Predicated region
    $region10: #{embedding3d_forward.1} parent=1 // pred_check
      _
    $region11: #{embedding3d_forward.1} parent=1 // pred_check_branch
      %25 = sbr.rel (0) target = $region13
    $region12: #{embedding3d_forward.1} parent=1 // pred_region
      %27 = dma.done [#allocation3], 1024
    $region13: #{embedding3d_forward.1} parent=1 // pred_fallthru
      _
    %v28 = vld [vmem:[%s0] sm:$0xff]
    %v29 = vld [vmem:[%s0 + $0x8] sm:$0xff]
    %v30 = vlaneseq
    %v31 = vand.u32 %v30, 127
    %32 = vset.pattern.permute.xlu0 0
    %33 = vperm.xlu0 %32, %v28
    %v34 = vpop.permute.xlu0 %33
    %35 = vset.pattern.permute.xlu0 0
    %36 = vperm.xlu0 %35, %v29
    %v37 = vpop.permute.xlu0 %36
    %vm38 = vcmp.eq.s32.totalorder %v34, %v31
    %vm39 = vcmp.eq.s32.totalorder %v37, %v31
    %v40 = vsel %vm38, 1.0, 0.0
    %v41 = vsel %vm39, 1.0, 0.0
    %v42 = vld [vmem:[#allocation2] sm:$0xff]
    %v43 = vld [vmem:[#allocation2 + $0x8] sm:$0xff]
    %v44 = vld [vmem:[#allocation2 + $0x10] sm:$0xff]
    %v45 = vld [vmem:[#allocation2 + $0x18] sm:$0xff]
    %v46 = vld [vmem:[#allocation2 + $0x20] sm:$0xff]
    %v47 = vld [vmem:[#allocation2 + $0x28] sm:$0xff]
    %v48 = vld [vmem:[#allocation2 + $0x30] sm:$0xff]
    %v49 = vld [vmem:[#allocation2 + $0x38] sm:$0xff]
    %vm50 = vcmask 523264
    %v52 = vsel %vm50, %v40, 0
    %v55 = vsel %vm50, %v41, 0
    %57 = vmatpush.msra.mxu0 0.0
    %58 = vmatpush.msra.mxu0 0.0
    %59 = vmatpush.msra.mxu0 0.0
    %60 = vmatpush.msra.mxu0 0.0
    %61 = vmatpush.msra.mxu0 0.0
    %62 = vmatpush.msra.mxu0 0.0
    %63 = vmatpush.msra.mxu0 0.0
    %64 = vmatpush.msra.mxu0 0.0
    %65 = vmatpush.msra.mxu0 %v49
    %66 = vmatpush.msra.mxu0 %v48
    %67 = vmatpush.msra.mxu0 %v47
    %68 = vmatpush.msra.mxu0 %v46
    %69 = vmatpush.msra.mxu0 %v45
    %70 = vmatpush.msra.mxu0 %v44
    %71 = vmatpush.msra.mxu0 %v43
    %72 = vmatpush.msra.mxu0 %v42
    %73 = vmatmul.f32.gmra.mxu0 %v52
    %v74 = vpop.f32.mrf.mxu0
    %v75 = vadd.f32 0.0, %v74
    %76 = vmatmul.f32.gmra.mxu0 %v55
    %v77 = vpop.f32.mrf.mxu0
    %v78 = vadd.f32 0.0, %v77
    %79 = vdwg.mxu0
    %80 = vst [vmem:[#allocation5] sm:$0xff] %v75
    %81 = vst [vmem:[#allocation5 + $0x8] sm:$0xff] %v78
    // Predicated region
    $region14: #{embedding3d_forward.1} parent=1 // pred_check
      _
    $region15: #{embedding3d_forward.1} parent=1 // pred_check_branch
      %83 = sbr.rel (0) target = $region17
    $region16: #{embedding3d_forward.1} parent=1 // pred_region
      %85 = vsyncadd [#allocation4], 0
      %s86 = sshll.u32 [#allocation5], 4
      %s87 = int_to_ptr.vmem [resolvable:$true] %s86
      %s88 = sshll.u32 %s2, 4
      %s89 = int_to_ptr.hbm [resolvable:$true] %s88
      %94 = dma.vmem_to_hbm [thread:$0]  %s87, 256, %s89, [#allocation4], 128, 128, 8
    $region17: #{embedding3d_forward.1} parent=1 // pred_fallthru
      _
    // Predicated region
    $region18: #{embedding3d_forward.1} parent=1 // pred_check
      _
    $region19: #{embedding3d_forward.1} parent=1 // pred_check_branch
      %96 = sbr.rel (0) target = $region21
    $region20: #{embedding3d_forward.1} parent=1 // pred_region
      %98 = dma.done [#allocation4], 256
    $region21: #{embedding3d_forward.1} parent=1 // pred_fallthru
      _
    %99 = vsyncpa [#allocation3], 1
    %100 = vsyncpa [#allocation4], 1

</llo_original>
